<compile_context>
chip_gen: v7x
topology: tpu7x:2x2x1
jax: 0.10.0
libtpu: 0.0.40
codegen_flags: <defaults>
</compile_context>

<pallas_src>
import jax
import jax.numpy as jnp
from jax.experimental import pallas as pl
from jax.experimental.pallas import tpu as pltpu


def mexican_hat(t):
    # Mother wavelet: phi(t) = (1 - t^2) * exp(-t^2 / 2)
    tt = t * t
    return (1.0 - tt) * jnp.exp(-0.5 * tt)


def _wnn_kernel(x_ref, w_trn_ref, w_invdil_ref, w_wvl_ref, w_lin_ref, bias_ref, o_ref):
    # x_ref:        (Bt, C, L)   VMEM   (L on lanes, C on sublanes)
    # w_trn_ref:    (C, H, 1)    VMEM
    # w_invdil_ref: (C, H, 1)    VMEM   (precomputed 1 / w_dil, exact)
    # w_wvl_ref:    (H, 1)       VMEM
    # w_lin_ref:    (1, C)       SMEM   (scalars)
    # bias_ref:     (1, 1)       SMEM   (scalar)
    # o_ref:        (Bt, 1, L)   VMEM
    n_ch = x_ref.shape[1]

    prod = None   # running product over channels of phi -> (Bt, H, L), dense on sublanes
    lin = None    # running sum over channels of w_lin[c] * x[:, c, :] -> (Bt, 1, L)

    # C is small and static -> unrolled Python loop.
    for c in range(n_ch):
        x_c = x_ref[:, pl.ds(c, 1), :]                    # (Bt, 1, L)
        # (Bt, 1, L) broadcast against (H, 1) -> (Bt, H, L); multiply by precomputed
        # reciprocal instead of dividing the big tensor.
        t = (x_c - w_trn_ref[c]) * w_invdil_ref[c]        # (Bt, H, L)
        phi = mexican_hat(t)                              # (Bt, H, L)
        prod = phi if prod is None else prod * phi

        lc = w_lin_ref[0, c] * x_c                        # scalar * (Bt, 1, L)
        lin = lc if lin is None else lin + lc

    # Weighted sum over hidden units (sublane add-reduce) -> (Bt, 1, L)
    sum_hu = jnp.sum(w_wvl_ref[...] * prod, axis=1, keepdims=True)

    o_ref[...] = (bias_ref[0, 0] + sum_hu + lin).astype(o_ref.dtype)


def multidim_wn_forward(x, w_trn, w_dil, w_wvl, w_lin, bias, *, block_bs=None):
    """x: [BS, C, L] f32; w_trn/w_dil: [C, H, 1]; w_wvl: [H, 1]; w_lin: [C, 1];
    bias: [1, 1]. Returns [BS, 1, L]."""
    bs, c, L = x.shape
    h = w_trn.shape[1]

    if block_bs is None:
        block_bs = 256
    block_bs = min(block_bs, bs)
    grid_b = pl.cdiv(bs, block_bs)

    # Tiny parameter-side precompute (C*H elements): exact reciprocal of the dilation.
    w_invdil = (1.0 / w_dil).astype(x.dtype)
    w_lin2 = w_lin.reshape(1, c)
    bias2 = bias.reshape(1, 1)

    return pl.pallas_call(
        _wnn_kernel,
        out_shape=jax.ShapeDtypeStruct((bs, 1, L), x.dtype),
        grid_spec=pltpu.PrefetchScalarGridSpec(
            num_scalar_prefetch=0,
            grid=(grid_b,),
            in_specs=[
                pl.BlockSpec((block_bs, c, L), lambda b: (b, 0, 0)),   # x (batch-tiled)
                pl.BlockSpec((c, h, 1), lambda b: (0, 0, 0)),          # w_trn
                pl.BlockSpec((c, h, 1), lambda b: (0, 0, 0)),          # 1 / w_dil
                pl.BlockSpec((h, 1), lambda b: (0, 0)),                # w_wvl
                pl.BlockSpec(memory_space=pltpu.MemorySpace.SMEM),     # w_lin (1, C)
                pl.BlockSpec(memory_space=pltpu.MemorySpace.SMEM),     # bias  (1, 1)
            ],
            out_specs=pl.BlockSpec((block_bs, 1, L), lambda b: (b, 0, 0)),
        ),
        compiler_params=pltpu.CompilerParams(
            dimension_semantics=("parallel",),
            vmem_limit_bytes=32 * 1024 * 1024,
        ),
    )(x, w_trn, w_invdil, w_wvl, w_lin2, bias2)


def reference(x, w_trn, w_dil, w_wvl, w_lin, bias):
    """Pure-JAX transcription of the PyTorch forward (for verification)."""
    x_xp = x[:, :, None, :]                                     # (BS, C, 1, L)
    t = (x_xp - w_trn[None]) / w_dil[None]                      # (BS, C, H, L)
    hu = w_wvl[None, None] * jnp.prod(mexican_hat(t), axis=1, keepdims=True)  # (BS,1,H,L)
    sum_hu = jnp.sum(hu, axis=2, keepdims=True)                 # (BS, 1, 1, L)
    lin = jnp.sum(w_lin[None] * x, axis=1, keepdims=True)[:, :, None, :]      # (BS,1,1,L)
    return jnp.squeeze(bias[0, 0] + sum_hu + lin, axis=2)       # (BS, 1, L)


if __name__ == "__main__":
    bs, c, h, L = 32, 4, 8, 128
    key = jax.random.PRNGKey(0)
    k1, k2, k3, k4, k5 = jax.random.split(key, 5)

    x = jax.random.normal(k1, (bs, c, L), jnp.float32)

    # Parameter shapes follow MultiDimWN.__init__ (leading singleton batch dims dropped);
    # defaults (ones/zeros) are deterministically perturbed so every term is exercised.
    w_wvl = jnp.ones((h, 1), jnp.float32) + 0.1 * jax.random.normal(k2, (h, 1), jnp.float32)
    w_lin = 0.1 * jax.random.normal(k3, (c, 1), jnp.float32)
    w_trn = 0.1 * jax.random.normal(k4, (c, h, 1), jnp.float32)
    w_dil = jnp.ones((c, h, 1), jnp.float32) + 0.1 * jax.random.normal(k5, (c, h, 1), jnp.float32)
    bias = jnp.array([[0.25]], jnp.float32)

    # block_bs=8 -> grid of 4 batch tiles (exercises the batch-tiled pipeline and
    # gives the "parallel" axis >= 2 steps for multi-TC chips).
    out = multidim_wn_forward(x, w_trn, w_dil, w_wvl, w_lin, bias, block_bs=8)
    out = jax.block_until_ready(out)

    ref = reference(x, w_trn, w_dil, w_wvl, w_lin, bias)
    assert out.shape == (bs, 1, L), out.shape
    assert jnp.allclose(out, ref, rtol=1e-5, atol=1e-5), float(jnp.max(jnp.abs(out - ref)))
    print("KERNEL_OK")
</pallas_src>

<mosaic_0001>
module attributes {stable_mosaic.version = 11 : i64} {
  func.func @_wnn_kernel(%arg0: i32, %arg1: memref<8x4x128xf32, #tpu.memory_space<vmem>>, %arg2: memref<4x8x1xf32, #tpu.memory_space<vmem>>, %arg3: memref<4x8x1xf32, #tpu.memory_space<vmem>>, %arg4: memref<8x1xf32, #tpu.memory_space<vmem>>, %arg5: memref<1x4xf32, #tpu.memory_space<smem>>, %arg6: memref<1x1xf32, #tpu.memory_space<smem>>, %arg7: memref<8x1x128xf32, #tpu.memory_space<vmem>>) attributes {dimension_semantics = [#tpu.dimension_semantics<parallel>], iteration_bounds = array<i64: 4>, scalar_prefetch = 0 : i64, scratch_operands = 0 : i64, tpu.core_type = #tpu.core_type<tc>, window_params = [{transform_indices = @transform_0, window_bounds = array<i64: 8, 4, 128>}, {pipeline_mode = #tpu.pipeline_mode<synchronous>, transform_indices = @transform_1, window_bounds = array<i64: 4, 8, 1>}, {pipeline_mode = #tpu.pipeline_mode<synchronous>, transform_indices = @transform_2, window_bounds = array<i64: 4, 8, 1>}, {pipeline_mode = #tpu.pipeline_mode<synchronous>, transform_indices = @transform_3, window_bounds = array<i64: 8, 1>}, {transform_indices = @transform_4, window_bounds = array<i64: 1, 4>}, {transform_indices = @transform_5, window_bounds = array<i64: 1, 1>}, {transform_indices = @transform_6, window_bounds = array<i64: 8, 1, 128>}]} {
    %c0 = arith.constant 0 : index
    %c0_0 = arith.constant 0 : index
    %c0_1 = arith.constant 0 : index
    %0 = vector.load %arg1[%c0, %c0_0, %c0_1] : memref<8x4x128xf32, #tpu.memory_space<vmem>>, vector<8x1x128xf32>
    %c0_2 = arith.constant 0 : index
    %c0_3 = arith.constant 0 : index
    %c0_4 = arith.constant 0 : index
    %1 = vector.load %arg2[%c0_2, %c0_3, %c0_4] : memref<4x8x1xf32, #tpu.memory_space<vmem>>, vector<1x8x1xf32>
    %2 = vector.shape_cast %1 : vector<1x8x1xf32> to vector<8x1xf32>
    %3 = vector.shape_cast %2 : vector<8x1xf32> to vector<1x8x1xf32>
    %4 = vector.broadcast %0 : vector<8x1x128xf32> to vector<8x8x128xf32>
    %5 = vector.broadcast %3 : vector<1x8x1xf32> to vector<8x8x128xf32>
    %6 = arith.subf %4, %5 : vector<8x8x128xf32>
    %c0_5 = arith.constant 0 : index
    %c0_6 = arith.constant 0 : index
    %c0_7 = arith.constant 0 : index
    %7 = vector.load %arg3[%c0_5, %c0_6, %c0_7] : memref<4x8x1xf32, #tpu.memory_space<vmem>>, vector<1x8x1xf32>
    %8 = vector.shape_cast %7 : vector<1x8x1xf32> to vector<8x1xf32>
    %9 = vector.shape_cast %8 : vector<8x1xf32> to vector<1x8x1xf32>
    %10 = vector.broadcast %9 : vector<1x8x1xf32> to vector<8x8x128xf32>
    %11 = arith.mulf %6, %10 : vector<8x8x128xf32>
    %12 = arith.mulf %11, %11 : vector<8x8x128xf32>
    %cst = arith.constant 1.000000e+00 : f32
    %13 = vector.broadcast %cst : f32 to vector<8x8x128xf32>
    %14 = arith.subf %13, %12 : vector<8x8x128xf32>
    %cst_8 = arith.constant -5.000000e-01 : f32
    %15 = vector.broadcast %cst_8 : f32 to vector<8x8x128xf32>
    %16 = arith.mulf %15, %12 : vector<8x8x128xf32>
    %17 = math.exp %16 : vector<8x8x128xf32>
    %18 = arith.mulf %14, %17 : vector<8x8x128xf32>
    %c0_9 = arith.constant 0 : index
    %c0_10 = arith.constant 0 : index
    %19 = memref.load %arg5[%c0_9, %c0_10] : memref<1x4xf32, #tpu.memory_space<smem>>
    %20 = vector.broadcast %19 : f32 to vector<8x1x128xf32>
    %21 = arith.mulf %20, %0 : vector<8x1x128xf32>
    %c0_11 = arith.constant 0 : index
    %c1 = arith.constant 1 : index
    %c0_12 = arith.constant 0 : index
    %22 = vector.load %arg1[%c0_11, %c1, %c0_12] : memref<8x4x128xf32, #tpu.memory_space<vmem>>, vector<8x1x128xf32>
    %c1_13 = arith.constant 1 : index
    %c0_14 = arith.constant 0 : index
    %c0_15 = arith.constant 0 : index
    %23 = vector.load %arg2[%c1_13, %c0_14, %c0_15] : memref<4x8x1xf32, #tpu.memory_space<vmem>>, vector<1x8x1xf32>
    %24 = vector.shape_cast %23 : vector<1x8x1xf32> to vector<8x1xf32>
    %25 = vector.shape_cast %24 : vector<8x1xf32> to vector<1x8x1xf32>
    %26 = vector.broadcast %22 : vector<8x1x128xf32> to vector<8x8x128xf32>
    %27 = vector.broadcast %25 : vector<1x8x1xf32> to vector<8x8x128xf32>
    %28 = arith.subf %26, %27 : vector<8x8x128xf32>
    %c1_16 = arith.constant 1 : index
    %c0_17 = arith.constant 0 : index
    %c0_18 = arith.constant 0 : index
    %29 = vector.load %arg3[%c1_16, %c0_17, %c0_18] : memref<4x8x1xf32, #tpu.memory_space<vmem>>, vector<1x8x1xf32>
    %30 = vector.shape_cast %29 : vector<1x8x1xf32> to vector<8x1xf32>
    %31 = vector.shape_cast %30 : vector<8x1xf32> to vector<1x8x1xf32>
    %32 = vector.broadcast %31 : vector<1x8x1xf32> to vector<8x8x128xf32>
    %33 = arith.mulf %28, %32 : vector<8x8x128xf32>
    %34 = arith.mulf %33, %33 : vector<8x8x128xf32>
    %cst_19 = arith.constant 1.000000e+00 : f32
    %35 = vector.broadcast %cst_19 : f32 to vector<8x8x128xf32>
    %36 = arith.subf %35, %34 : vector<8x8x128xf32>
    %cst_20 = arith.constant -5.000000e-01 : f32
    %37 = vector.broadcast %cst_20 : f32 to vector<8x8x128xf32>
    %38 = arith.mulf %37, %34 : vector<8x8x128xf32>
    %39 = math.exp %38 : vector<8x8x128xf32>
    %40 = arith.mulf %36, %39 : vector<8x8x128xf32>
    %41 = arith.mulf %18, %40 : vector<8x8x128xf32>
    %c0_21 = arith.constant 0 : index
    %c1_22 = arith.constant 1 : index
    %42 = memref.load %arg5[%c0_21, %c1_22] : memref<1x4xf32, #tpu.memory_space<smem>>
    %43 = vector.broadcast %42 : f32 to vector<8x1x128xf32>
    %44 = arith.mulf %43, %22 : vector<8x1x128xf32>
    %45 = arith.addf %21, %44 : vector<8x1x128xf32>
    %c0_23 = arith.constant 0 : index
    %c2 = arith.constant 2 : index
    %c0_24 = arith.constant 0 : index
    %46 = vector.load %arg1[%c0_23, %c2, %c0_24] : memref<8x4x128xf32, #tpu.memory_space<vmem>>, vector<8x1x128xf32>
    %c2_25 = arith.constant 2 : index
    %c0_26 = arith.constant 0 : index
    %c0_27 = arith.constant 0 : index
    %47 = vector.load %arg2[%c2_25, %c0_26, %c0_27] : memref<4x8x1xf32, #tpu.memory_space<vmem>>, vector<1x8x1xf32>
    %48 = vector.shape_cast %47 : vector<1x8x1xf32> to vector<8x1xf32>
    %49 = vector.shape_cast %48 : vector<8x1xf32> to vector<1x8x1xf32>
    %50 = vector.broadcast %46 : vector<8x1x128xf32> to vector<8x8x128xf32>
    %51 = vector.broadcast %49 : vector<1x8x1xf32> to vector<8x8x128xf32>
    %52 = arith.subf %50, %51 : vector<8x8x128xf32>
    %c2_28 = arith.constant 2 : index
    %c0_29 = arith.constant 0 : index
    %c0_30 = arith.constant 0 : index
    %53 = vector.load %arg3[%c2_28, %c0_29, %c0_30] : memref<4x8x1xf32, #tpu.memory_space<vmem>>, vector<1x8x1xf32>
    %54 = vector.shape_cast %53 : vector<1x8x1xf32> to vector<8x1xf32>
    %55 = vector.shape_cast %54 : vector<8x1xf32> to vector<1x8x1xf32>
    %56 = vector.broadcast %55 : vector<1x8x1xf32> to vector<8x8x128xf32>
    %57 = arith.mulf %52, %56 : vector<8x8x128xf32>
    %58 = arith.mulf %57, %57 : vector<8x8x128xf32>
    %cst_31 = arith.constant 1.000000e+00 : f32
    %59 = vector.broadcast %cst_31 : f32 to vector<8x8x128xf32>
    %60 = arith.subf %59, %58 : vector<8x8x128xf32>
    %cst_32 = arith.constant -5.000000e-01 : f32
    %61 = vector.broadcast %cst_32 : f32 to vector<8x8x128xf32>
    %62 = arith.mulf %61, %58 : vector<8x8x128xf32>
    %63 = math.exp %62 : vector<8x8x128xf32>
    %64 = arith.mulf %60, %63 : vector<8x8x128xf32>
    %65 = arith.mulf %41, %64 : vector<8x8x128xf32>
    %c0_33 = arith.constant 0 : index
    %c2_34 = arith.constant 2 : index
    %66 = memref.load %arg5[%c0_33, %c2_34] : memref<1x4xf32, #tpu.memory_space<smem>>
    %67 = vector.broadcast %66 : f32 to vector<8x1x128xf32>
    %68 = arith.mulf %67, %46 : vector<8x1x128xf32>
    %69 = arith.addf %45, %68 : vector<8x1x128xf32>
    %c0_35 = arith.constant 0 : index
    %c3 = arith.constant 3 : index
    %c0_36 = arith.constant 0 : index
    %70 = vector.load %arg1[%c0_35, %c3, %c0_36] : memref<8x4x128xf32, #tpu.memory_space<vmem>>, vector<8x1x128xf32>
    %c3_37 = arith.constant 3 : index
    %c0_38 = arith.constant 0 : index
    %c0_39 = arith.constant 0 : index
    %71 = vector.load %arg2[%c3_37, %c0_38, %c0_39] : memref<4x8x1xf32, #tpu.memory_space<vmem>>, vector<1x8x1xf32>
    %72 = vector.shape_cast %71 : vector<1x8x1xf32> to vector<8x1xf32>
    %73 = vector.shape_cast %72 : vector<8x1xf32> to vector<1x8x1xf32>
    %74 = vector.broadcast %70 : vector<8x1x128xf32> to vector<8x8x128xf32>
    %75 = vector.broadcast %73 : vector<1x8x1xf32> to vector<8x8x128xf32>
    %76 = arith.subf %74, %75 : vector<8x8x128xf32>
    %c3_40 = arith.constant 3 : index
    %c0_41 = arith.constant 0 : index
    %c0_42 = arith.constant 0 : index
    %77 = vector.load %arg3[%c3_40, %c0_41, %c0_42] : memref<4x8x1xf32, #tpu.memory_space<vmem>>, vector<1x8x1xf32>
    %78 = vector.shape_cast %77 : vector<1x8x1xf32> to vector<8x1xf32>
    %79 = vector.shape_cast %78 : vector<8x1xf32> to vector<1x8x1xf32>
    %80 = vector.broadcast %79 : vector<1x8x1xf32> to vector<8x8x128xf32>
    %81 = arith.mulf %76, %80 : vector<8x8x128xf32>
    %82 = arith.mulf %81, %81 : vector<8x8x128xf32>
    %cst_43 = arith.constant 1.000000e+00 : f32
    %83 = vector.broadcast %cst_43 : f32 to vector<8x8x128xf32>
    %84 = arith.subf %83, %82 : vector<8x8x128xf32>
    %cst_44 = arith.constant -5.000000e-01 : f32
    %85 = vector.broadcast %cst_44 : f32 to vector<8x8x128xf32>
    %86 = arith.mulf %85, %82 : vector<8x8x128xf32>
    %87 = math.exp %86 : vector<8x8x128xf32>
    %88 = arith.mulf %84, %87 : vector<8x8x128xf32>
    %89 = arith.mulf %65, %88 : vector<8x8x128xf32>
    %c0_45 = arith.constant 0 : index
    %c3_46 = arith.constant 3 : index
    %90 = memref.load %arg5[%c0_45, %c3_46] : memref<1x4xf32, #tpu.memory_space<smem>>
    %91 = vector.broadcast %90 : f32 to vector<8x1x128xf32>
    %92 = arith.mulf %91, %70 : vector<8x1x128xf32>
    %93 = arith.addf %69, %92 : vector<8x1x128xf32>
    %c0_47 = arith.constant 0 : index
    %c0_48 = arith.constant 0 : index
    %94 = vector.load %arg4[%c0_47, %c0_48] : memref<8x1xf32, #tpu.memory_space<vmem>>, vector<8x1xf32>
    %95 = vector.shape_cast %94 : vector<8x1xf32> to vector<1x8x1xf32>
    %96 = vector.broadcast %95 : vector<1x8x1xf32> to vector<8x8x128xf32>
    %97 = arith.mulf %96, %89 : vector<8x8x128xf32>
    %cst_49 = arith.constant dense<0.000000e+00> : vector<8x128xf32>
    %98 = vector.multi_reduction <add>, %97, %cst_49 [1] : vector<8x8x128xf32> to vector<8x128xf32>
    %99 = vector.shape_cast %98 : vector<8x128xf32> to vector<8x1x128xf32>
    %c0_50 = arith.constant 0 : index
    %c0_51 = arith.constant 0 : index
    %100 = memref.load %arg6[%c0_50, %c0_51] : memref<1x1xf32, #tpu.memory_space<smem>>
    %101 = vector.broadcast %100 : f32 to vector<8x1x128xf32>
    %102 = arith.addf %101, %99 : vector<8x1x128xf32>
    %103 = arith.addf %102, %93 : vector<8x1x128xf32>
    %c0_52 = arith.constant 0 : index
    %c0_53 = arith.constant 0 : index
    %c0_54 = arith.constant 0 : index
    %104 = vector.load %arg7[%c0_52, %c0_53, %c0_54] : memref<8x1x128xf32, #tpu.memory_space<vmem>>, vector<8x1x128xf32>
    tpu.vector_store %arg7[%c0_52, %c0_53, %c0_54], %103 {strides = array<i32>} : memref<8x1x128xf32, #tpu.memory_space<vmem>>, vector<8x1x128xf32>,
    return
  }
  func.func @transform_0(%arg0: i32) -> (i32, i32, i32) {
    %c0_i32 = arith.constant 0 : i32
    %c0_i32_0 = arith.constant 0 : i32
    %c0_i32_1 = arith.constant 0 : i32
    return %arg0, %c0_i32, %c0_i32_0 : i32, i32, i32
  }
  func.func @transform_1(%arg0: i32) -> (i32, i32, i32) {
    %c0_i32 = arith.constant 0 : i32
    %c0_i32_0 = arith.constant 0 : i32
    %c0_i32_1 = arith.constant 0 : i32
    %c0_i32_2 = arith.constant 0 : i32
    return %c0_i32, %c0_i32_0, %c0_i32_1 : i32, i32, i32
  }
  func.func @transform_2(%arg0: i32) -> (i32, i32, i32) {
    %c0_i32 = arith.constant 0 : i32
    %c0_i32_0 = arith.constant 0 : i32
    %c0_i32_1 = arith.constant 0 : i32
    %c0_i32_2 = arith.constant 0 : i32
    return %c0_i32, %c0_i32_0, %c0_i32_1 : i32, i32, i32
  }
  func.func @transform_3(%arg0: i32) -> (i32, i32) {
    %c0_i32 = arith.constant 0 : i32
    %c0_i32_0 = arith.constant 0 : i32
    %c0_i32_1 = arith.constant 0 : i32
    return %c0_i32, %c0_i32_0 : i32, i32
  }
  func.func @transform_4(%arg0: i32) -> (i32, i32) {
    %c0_i32 = arith.constant 0 : i32
    %c0_i32_0 = arith.constant 0 : i32
    %c0_i32_1 = arith.constant 0 : i32
    return %c0_i32, %c0_i32_0 : i32, i32
  }
  func.func @transform_5(%arg0: i32) -> (i32, i32) {
    %c0_i32 = arith.constant 0 : i32
    %c0_i32_0 = arith.constant 0 : i32
    %c0_i32_1 = arith.constant 0 : i32
    return %c0_i32, %c0_i32_0 : i32, i32
  }
  func.func @transform_6(%arg0: i32) -> (i32, i32, i32) {
    %c0_i32 = arith.constant 0 : i32
    %c0_i32_0 = arith.constant 0 : i32
    %c0_i32_1 = arith.constant 0 : i32
    return %arg0, %c0_i32, %c0_i32_0 : i32, i32, i32
  }
}

</mosaic_0001>

<llo_original>
// kernel: tpu_custom_call.1
$region0: #{tpu_custom_call.1}
  #allocation0 [shape = 'u32[]', space=smem, size = 0x4, offset = 0x4, fixed_abs, tag = 'smem constant byte address 0x4 - core index']
  #allocation1 [shape = 'u32[144,128]{1,0:T(1,128)}', space=vmem, size = 0x12000, scoped, tag = 'internal scratch']
  #allocation2 [shape = 'f32[1,1]{1,0:T(1,128)S(6)}', space=smem, size = 0x200, scoped, tag = 'scoped memory for tpu_custom_call.1']
  %s0 = inlined_call_operand.hbm [shape: f32[32,4,128], index: 0, kind: input, shape index: {}]
  %s1 = inlined_call_operand.vmem [shape: f32[4,8,1], index: 1, kind: input, shape index: {}]
  %s2 = inlined_call_operand.vmem [shape: f32[4,8,1], index: 2, kind: input, shape index: {}]
  %s3 = inlined_call_operand.vmem [shape: f32[8,1], index: 3, kind: input, shape index: {}]
  %s4 = inlined_call_operand.vmem [shape: f32[1,4], index: 4, kind: input, shape index: {}]
  %s5 = inlined_call_operand.<no memory space> [shape: f32[1,1], index: 5, kind: input, shape index: {}]
  %s6 = inlined_call_operand.hbm [shape: f32[32,1,128], index: 6, kind: output, shape index: {}]
  %s7 = sld [smem:[#allocation0]]
  $region65: #{tpu_custom_call.1} parent=0
    _
  %s9 = ssub.s32 1, %s7
  %s10 = scalar_select 0, %s9, %s7
  %11 = sst [smem:[#allocation2]] %s5
  $region1: #{tpu_custom_call.1} parent=0
    #allocation3 [shape = 'u8[32768]{0}', space=vmem, size = 0x8000, scoped, tag = 'input window, operand 0']
    #allocation4 [shape = 's32[2]{0}', space=sflag, size = 0x8, scoped, tag = 'scoped memory for tpu_custom_call.1']
    #allocation5 [shape = 's32[2]{0}', space=sflag, size = 0x8, scoped, tag = 'scoped memory for tpu_custom_call.1']
    #allocation6 [shape = 's32[2]{0}', space=sflag, size = 0x8, scoped, tag = 'scoped memory for tpu_custom_call.1']
    #allocation7 [shape = 'u8[512]{0}', space=smem, size = 0x200, scoped, tag = 'input window, operand 4, single buffered']
    #allocation8 [shape = 'u8[8192]{0}', space=vmem, size = 0x2000, scoped, tag = 'output window, operand 0']
    %12 = vsyncpa [#allocation4], 0
    %s13 = scalar_lea.sflag [#allocation4], 1
    %14 = vsyncpa %s13, 0
    %15 = vsyncpa [#allocation6], 0
    %16 = vsyncpa [#allocation5], 0
    %s17 = scalar_lea.sflag [#allocation5], 1
    %18 = vsyncpa %s17, 0
    loop: start=0, step=1, limit=6
    $region2: #{tpu_custom_call.1} parent=1 // loop_pre_header
      _
    $region3: #{tpu_custom_call.1} parent=1 // loop_header
      %s20 = sphi 0, %s24
      %p21 = scmp.ge.s32.totalorder %s20, 6
      %s30 = sphi 0, %s32
      %s33 = sphi 0, %s30
      %s34 = sphi 0, %s33
      %s50 = sphi 0, %s34
      %s54 = sphi 0, %s54
      %s56 = sphi 0, %s54
      %s57 = sphi 0, %s56
      %s71 = sphi 0, %s57
      %s75 = sphi 0, %s75
      %s77 = sphi 0, %s75
      %s78 = sphi 0, %s77
      %s92 = sphi 0, %s78
      %s96 = sphi 0, %s96
      %s98 = sphi 0, %s96
      %s99 = sphi 0, %s98
      %s113 = sphi 0, %s99
      %s117 = sphi 0, %s117
      %s119 = sphi 0, %s117
      %s120 = sphi 0, %s119
      %s134 = sphi 0, %s120
      %s138 = sphi 0, %s138
      %s140 = sphi 0, %s138
      %s141 = sphi 0, %s140
      %s155 = sphi 0, %s141
      %s161 = sphi 0, %s163
      %s164 = sphi 0, %s161
      %s165 = sphi 0, %s164
      %s181 = sphi 0, %s165
    $region4: #{tpu_custom_call.1} parent=1 // loop_header_branch
      %23 = sbr.rel (%p21) target = $region8
    $region5: #{tpu_custom_call.1} parent=1 // loop_body
      %s25 = ssub.s32 %s20, 1
      %s26 = ssub.s32 %s20, 2
      %s27 = sadd.s32 %s20, 1
      %s28 = ssub.s32 %s20, %s27
      %p29 = scmp.eq.s32.totalorder %s28, 0
      %s31 = sadd.s32 %s30, 1
      %s32 = scalar_select %p29, %s30, %s31
      %p35 = pneg %p29
      %p36 = scmp.eq.s32.totalorder %s20, 3
      %p37 = por %p35, %p36
      %p38 = scmp.ne.s32.totalorder %s30, %s33
      %p39 = scmp.eq.s32.totalorder %s20, 0
      %p40 = por %p38, %p39
      %p41 = scmp.ne.s32.totalorder %s30, %s33
      %p42 = scmp.eq.s32.totalorder %s25, 3
      %p43 = por %p41, %p42
      %p44 = scmp.ne.s32.totalorder %s33, %s34
      %p45 = scmp.eq.s32.totalorder %s25, 0
      %p46 = por %p44, %p45
      %p47 = scmp.ne.s32.totalorder %s33, %s34
      %p48 = scmp.eq.s32.totalorder %s26, 3
      %p49 = por %p47, %p48
      %p51 = scmp.ne.s32.totalorder %s34, %s50
      %p52 = scmp.eq.s32.totalorder %s26, 0
      %p53 = por %p51, %p52
      %s55 = sadd.s32 %s54, 1
      %p58 = scmp.eq.s32.totalorder %s20, 3
      %p59 = scmp.ne.s32.totalorder %s54, %s56
      %p60 = scmp.eq.s32.totalorder %s20, 0
      %p61 = por %p59, %p60
      %p62 = scmp.ne.s32.totalorder %s54, %s56
      %p63 = scmp.eq.s32.totalorder %s25, 3
      %p64 = por %p62, %p63
      %p65 = scmp.ne.s32.totalorder %s56, %s57
      %p66 = scmp.eq.s32.totalorder %s25, 0
      %p67 = por %p65, %p66
      %p68 = scmp.ne.s32.totalorder %s56, %s57
      %p69 = scmp.eq.s32.totalorder %s26, 3
      %p70 = por %p68, %p69
      %p72 = scmp.ne.s32.totalorder %s57, %s71
      %p73 = scmp.eq.s32.totalorder %s26, 0
      %p74 = por %p72, %p73
      %s76 = sadd.s32 %s75, 1
      %p79 = scmp.eq.s32.totalorder %s20, 3
      %p80 = scmp.ne.s32.totalorder %s75, %s77
      %p81 = scmp.eq.s32.totalorder %s20, 0
      %p82 = por %p80, %p81
      %p83 = scmp.ne.s32.totalorder %s75, %s77
      %p84 = scmp.eq.s32.totalorder %s25, 3
      %p85 = por %p83, %p84
      %p86 = scmp.ne.s32.totalorder %s77, %s78
      %p87 = scmp.eq.s32.totalorder %s25, 0
      %p88 = por %p86, %p87
      %p89 = scmp.ne.s32.totalorder %s77, %s78
      %p90 = scmp.eq.s32.totalorder %s26, 3
      %p91 = por %p89, %p90
      %p93 = scmp.ne.s32.totalorder %s78, %s92
      %p94 = scmp.eq.s32.totalorder %s26, 0
      %p95 = por %p93, %p94
      %s97 = sadd.s32 %s96, 1
      %p100 = scmp.eq.s32.totalorder %s20, 3
      %p101 = scmp.ne.s32.totalorder %s96, %s98
      %p102 = scmp.eq.s32.totalorder %s20, 0
      %p103 = por %p101, %p102
      %p104 = scmp.ne.s32.totalorder %s96, %s98
      %p105 = scmp.eq.s32.totalorder %s25, 3
      %p106 = por %p104, %p105
      %p107 = scmp.ne.s32.totalorder %s98, %s99
      %p108 = scmp.eq.s32.totalorder %s25, 0
      %p109 = por %p107, %p108
      %p110 = scmp.ne.s32.totalorder %s98, %s99
      %p111 = scmp.eq.s32.totalorder %s26, 3
      %p112 = por %p110, %p111
      %p114 = scmp.ne.s32.totalorder %s99, %s113
      %p115 = scmp.eq.s32.totalorder %s26, 0
      %p116 = por %p114, %p115
      %s118 = sadd.s32 %s117, 1
      %p121 = scmp.eq.s32.totalorder %s20, 3
      %p122 = scmp.ne.s32.totalorder %s117, %s119
      %p123 = scmp.eq.s32.totalorder %s20, 0
      %p124 = por %p122, %p123
      %p125 = scmp.ne.s32.totalorder %s117, %s119
      %p126 = scmp.eq.s32.totalorder %s25, 3
      %p127 = por %p125, %p126
      %p128 = scmp.ne.s32.totalorder %s119, %s120
      %p129 = scmp.eq.s32.totalorder %s25, 0
      %p130 = por %p128, %p129
      %p131 = scmp.ne.s32.totalorder %s119, %s120
      %p132 = scmp.eq.s32.totalorder %s26, 3
      %p133 = por %p131, %p132
      %p135 = scmp.ne.s32.totalorder %s120, %s134
      %p136 = scmp.eq.s32.totalorder %s26, 0
      %p137 = por %p135, %p136
      %s139 = sadd.s32 %s138, 1
      %p142 = scmp.eq.s32.totalorder %s20, 3
      %p143 = scmp.ne.s32.totalorder %s138, %s140
      %p144 = scmp.eq.s32.totalorder %s20, 0
      %p145 = por %p143, %p144
      %p146 = scmp.ne.s32.totalorder %s138, %s140
      %p147 = scmp.eq.s32.totalorder %s25, 3
      %p148 = por %p146, %p147
      %p149 = scmp.ne.s32.totalorder %s140, %s141
      %p150 = scmp.eq.s32.totalorder %s25, 0
      %p151 = por %p149, %p150
      %p152 = scmp.ne.s32.totalorder %s140, %s141
      %p153 = scmp.eq.s32.totalorder %s26, 3
      %p154 = por %p152, %p153
      %p156 = scmp.ne.s32.totalorder %s141, %s155
      %p157 = scmp.eq.s32.totalorder %s26, 0
      %p158 = por %p156, %p157
      %s159 = ssub.s32 %s20, %s27
      %p160 = scmp.eq.s32.totalorder %s159, 0
      %s162 = sadd.s32 %s161, 1
      %s163 = scalar_select %p160, %s161, %s162
      %p166 = pneg %p160
      %p167 = scmp.eq.s32.totalorder %s20, 3
      %p168 = por %p166, %p167
      %p169 = scmp.ne.s32.totalorder %s161, %s164
      %p170 = scmp.eq.s32.totalorder %s20, 0
      %p171 = por %p169, %p170
      %p172 = scmp.ne.s32.totalorder %s161, %s164
      %p173 = scmp.eq.s32.totalorder %s25, 3
      %p174 = por %p172, %p173
      %p175 = scmp.ne.s32.totalorder %s164, %s165
      %p176 = scmp.eq.s32.totalorder %s25, 0
      %p177 = por %p175, %p176
      %p178 = scmp.ne.s32.totalorder %s164, %s165
      %p179 = scmp.eq.s32.totalorder %s26, 3
      %p180 = por %p178, %p179
      %p182 = scmp.ne.s32.totalorder %s165, %s181
      %p183 = scmp.eq.s32.totalorder %s26, 0
      %p184 = por %p182, %p183
      %p185 = scmp.le.s32.totalorder 1, %s20
      %p186 = scmp.lt.s32.totalorder %s20, 5
      %p187 = pnand %p185, %p186
      %p188 = pneg %p187
      // Predicated region
      $region9: #{tpu_custom_call.1} parent=5 // pred_check
        _
      $region10: #{tpu_custom_call.1} parent=5 // pred_check_branch
        %190 = sbr.rel (%p187) target = $region12
      $region11: #{tpu_custom_call.1} parent=5 // pred_region
        %s191 = ssub.s32 %s20, 1
        // Predicated region
        $region13: #{tpu_custom_call.1} parent=11 // pred_check
          %p192 = pneg %p67
        $region14: #{tpu_custom_call.1} parent=11 // pred_check_branch
          %194 = sbr.rel (%p192) target = $region16
        $region15: #{tpu_custom_call.1} parent=11 // pred_region
          _
        $region16: #{tpu_custom_call.1} parent=11 // pred_fallthru
          _
        // Predicated region
        $region17: #{tpu_custom_call.1} parent=11 // pred_check
          %p195 = pneg %p88
        $region18: #{tpu_custom_call.1} parent=11 // pred_check_branch
          %197 = sbr.rel (%p195) target = $region20
        $region19: #{tpu_custom_call.1} parent=11 // pred_region
          _
        $region20: #{tpu_custom_call.1} parent=11 // pred_fallthru
          _
        // Predicated region
        $region21: #{tpu_custom_call.1} parent=11 // pred_check
          %p198 = pneg %p109
        $region22: #{tpu_custom_call.1} parent=11 // pred_check_branch
          %200 = sbr.rel (%p198) target = $region24
        $region23: #{tpu_custom_call.1} parent=11 // pred_region
          _
        $region24: #{tpu_custom_call.1} parent=11 // pred_fallthru
          _
        // Predicated region
        $region25: #{tpu_custom_call.1} parent=11 // pred_check
          %p201 = pneg %p130
        $region26: #{tpu_custom_call.1} parent=11 // pred_check_branch
          %203 = sbr.rel (%p201) target = $region28
        $region27: #{tpu_custom_call.1} parent=11 // pred_region
          %s205 = ssub.s32 16, 16
          %206 = vsyncadd [#allocation6], %s205
          %s208 = sshll.u32 %s4, 4
          %s209 = int_to_ptr.vmem [resolvable:$true] %s208
          %211 = dma.vmem_to_smem %s209, 16, [#allocation7], [#allocation6]
        $region28: #{tpu_custom_call.1} parent=11 // pred_fallthru
          _
        // Predicated region
        $region29: #{tpu_custom_call.1} parent=11 // pred_check
          %p212 = pneg %p151
        $region30: #{tpu_custom_call.1} parent=11 // pred_check_branch
          %214 = sbr.rel (%p212) target = $region32
        $region31: #{tpu_custom_call.1} parent=11 // pred_region
          _
        $region32: #{tpu_custom_call.1} parent=11 // pred_fallthru
          _
      $region12: #{tpu_custom_call.1} parent=5 // pred_fallthru
        _
      %p215 = scmp.lt.s32.totalorder %s20, 4
      // Predicated region
      $region33: #{tpu_custom_call.1} parent=5 // pred_check
        %p216 = pneg %p215
      $region34: #{tpu_custom_call.1} parent=5 // pred_check_branch
        %218 = sbr.rel (%p216) target = $region36
      $region35: #{tpu_custom_call.1} parent=5 // pred_region
        // Predicated region
        $region37: #{tpu_custom_call.1} parent=35 // pred_check
          %p219 = pneg %p40
        $region38: #{tpu_custom_call.1} parent=35 // pred_check_branch
          %221 = sbr.rel (%p219) target = $region40
        $region39: #{tpu_custom_call.1} parent=35 // pred_region
          %s222 = sand.u32 %s30, 1
          %s223 = scalar_lea.sflag [#allocation4], %s222
          %s224 = sand.u32 %s30, 1
          %s225 = smul.addr %s224, 32
          %s226 = scalar_lea.vmem [#allocation3], %s225
          %s227 = smul.u32 8, %s20
          %s229 = ssub.s32 512, 512
          %230 = vsyncadd %s223, %s229
          %s231 = smul.addr %s227, 64
          %s232 = scalar_lea.hbm %s0, %s231
          %s233 = sshll.u32 %s226, 4
          %s234 = int_to_ptr.vmem [resolvable:$true] %s233
          %239 = dma.hbm_to_vmem [thread:$0]  %s232, 512, %s234, %s223, 64, 64, 4
        $region40: #{tpu_custom_call.1} parent=35 // pred_fallthru
          _
      $region36: #{tpu_custom_call.1} parent=5 // pred_fallthru
        _
      %p240 = scmp.le.s32.totalorder 1, %s20
      %p241 = scmp.lt.s32.totalorder %s20, 5
      %p242 = pnand %p240, %p241
      %p243 = pneg %p242
      // Predicated region
      $region41: #{tpu_custom_call.1} parent=5 // pred_check
        _
      $region42: #{tpu_custom_call.1} parent=5 // pred_check_branch
        %245 = sbr.rel (%p242) target = $region44
      $region43: #{tpu_custom_call.1} parent=5 // pred_region
        %s246 = ssub.s32 %s20, 1
        %s247 = sand.u32 %s33, 1
        %s248 = scalar_lea.sflag [#allocation4], %s247
        %s249 = sand.u32 %s33, 1
        %s250 = smul.addr %s249, 32
        %s251 = scalar_lea.vmem [#allocation3], %s250
        // Predicated region
        $region45: #{tpu_custom_call.1} parent=43 // pred_check
          %p252 = pneg %p46
        $region46: #{tpu_custom_call.1} parent=43 // pred_check_branch
          %254 = sbr.rel (%p252) target = $region48
        $region47: #{tpu_custom_call.1} parent=43 // pred_region
          %255 = dma.done %s248, 512
        $region48: #{tpu_custom_call.1} parent=43 // pred_fallthru
          _
        // Predicated region
        $region49: #{tpu_custom_call.1} parent=43 // pred_check
          %p256 = pneg %p130
        $region50: #{tpu_custom_call.1} parent=43 // pred_check_branch
          %258 = sbr.rel (%p256) target = $region52
        $region51: #{tpu_custom_call.1} parent=43 // pred_region
          %259 = dma.done [#allocation6], 16
        $region52: #{tpu_custom_call.1} parent=43 // pred_fallthru
          _
        %260 = sfence
        %s261 = sand.u32 %s33, 1
        %s262 = scalar_lea.sflag [#allocation4], %s261
        %s263 = sand.u32 %s33, 1
        %s264 = smul.addr %s263, 32
        %s265 = scalar_lea.vmem [#allocation3], %s264
        %p266 = pneg %p46
        %p267 = pneg %p43
        %p268 = pneg %p67
        %p269 = pneg %p64
        %p270 = pneg %p88
        %p271 = pneg %p85
        %p272 = pneg %p109
        %p273 = pneg %p106
        %p274 = pneg %p130
        %p275 = pneg %p127
        %p276 = pneg %p151
        %p277 = pneg %p148
        %p278 = pneg %p177
        %p279 = pneg %p174
        %s280 = sand.u32 %s164, 1
        %s281 = scalar_lea.sflag [#allocation5], %s280
        %s282 = sand.u32 %s164, 1
        %s283 = smul.addr %s282, 8
        %s284 = scalar_lea.vmem [#allocation8], %s283
        %s285 = smul.u32 8, %s25
        %s286 = smul.u32 8, %s25
        %v287 = vld [vmem:[%s251] sm:$0x1]
        %v288 = vld [vmem:[%s251 + $0x4] sm:$0x1]
        %v289 = vld [vmem:[%s251 + $0x8] sm:$0x1]
        %v290 = vld [vmem:[%s251 + $0xc] sm:$0x1]
        %v291 = vld [vmem:[%s251 + $0x10] sm:$0x1]
        %v292 = vld [vmem:[%s251 + $0x14] sm:$0x1]
        %v293 = vld [vmem:[%s251 + $0x18] sm:$0x1]
        %v294 = vld [vmem:[%s251 + $0x1c] sm:$0x1]
        %v295 = vld [vmem:[%s1] sm:$0xff]
        %v296 = vlaneseq
        %v297 = vshrl.u32 %v296, 7
        %v298 = vsub.s32 0, %v297
        %v299 = vrot.slane %v287, %v298
        %v300 = vlaneseq
        %v301 = vshrl.u32 %v300, 7
        %v302 = vsub.s32 0, %v301
        %v303 = vrot.slane %v288, %v302
        %v304 = vlaneseq
        %v305 = vshrl.u32 %v304, 7
        %v306 = vsub.s32 0, %v305
        %v307 = vrot.slane %v289, %v306
        %v308 = vlaneseq
        %v309 = vshrl.u32 %v308, 7
        %v310 = vsub.s32 0, %v309
        %v311 = vrot.slane %v290, %v310
        %v312 = vlaneseq
        %v313 = vshrl.u32 %v312, 7
        %v314 = vsub.s32 0, %v313
        %v315 = vrot.slane %v291, %v314
        %v316 = vlaneseq
        %v317 = vshrl.u32 %v316, 7
        %v318 = vsub.s32 0, %v317
        %v319 = vrot.slane %v292, %v318
        %v320 = vlaneseq
        %v321 = vshrl.u32 %v320, 7
        %v322 = vsub.s32 0, %v321
        %v323 = vrot.slane %v293, %v322
        %v324 = vlaneseq
        %v325 = vshrl.u32 %v324, 7
        %v326 = vsub.s32 0, %v325
        %v327 = vrot.slane %v294, %v326
        %329 = vset.pattern.permute.xlu0 0
        %330 = vperm.xlu0 %329, %v295
        %v331 = vpop.permute.xlu0 %330
        %v333 = vsub.f32 %v299, %v331
        %v334 = vsub.f32 %v303, %v331
        %v335 = vsub.f32 %v307, %v331
        %v336 = vsub.f32 %v311, %v331
        %v337 = vsub.f32 %v315, %v331
        %v338 = vsub.f32 %v319, %v331
        %v339 = vsub.f32 %v323, %v331
        %v340 = vsub.f32 %v327, %v331
        %v341 = vld [vmem:[%s2] sm:$0xff]
        %343 = vset.pattern.permute.xlu0 0
        %344 = vperm.xlu0 %343, %v341
        %v345 = vpop.permute.xlu0 %344
        %v347 = vmul.f32 %v333, %v345
        %v348 = vmul.f32 %v334, %v345
        %v349 = vmul.f32 %v335, %v345
        %v350 = vmul.f32 %v336, %v345
        %v351 = vmul.f32 %v337, %v345
        %v352 = vmul.f32 %v338, %v345
        %v353 = vmul.f32 %v339, %v345
        %v354 = vmul.f32 %v340, %v345
        %v355 = vmul.f32 %v347, %v347
        %v356 = vmul.f32 %v348, %v348
        %v357 = vmul.f32 %v349, %v349
        %v358 = vmul.f32 %v350, %v350
        %v359 = vmul.f32 %v351, %v351
        %v360 = vmul.f32 %v352, %v352
        %v361 = vmul.f32 %v353, %v353
        %v362 = vmul.f32 %v354, %v354
        %v363 = vsub.f32 1.0, %v355
        %v364 = vsub.f32 1.0, %v356
        %v365 = vsub.f32 1.0, %v357
        %v366 = vsub.f32 1.0, %v358
        %v367 = vsub.f32 1.0, %v359
        %v368 = vsub.f32 1.0, %v360
        %v369 = vsub.f32 1.0, %v361
        %v370 = vsub.f32 1.0, %v362
        %v371 = vmul.f32 %v355, -0.5
        %v372 = vmul.f32 %v356, -0.5
        %v373 = vmul.f32 %v357, -0.5
        %v374 = vmul.f32 %v358, -0.5
        %v375 = vmul.f32 %v359, -0.5
        %v376 = vmul.f32 %v360, -0.5
        %v377 = vmul.f32 %v361, -0.5
        %v378 = vmul.f32 %v362, -0.5
        %v379 = vmul.f32 %v371, 1.442695
        %v380 = vpow.pop %v379
        %v381 = vmul.f32 %v372, 1.442695
        %v382 = vpow.pop %v381
        %v383 = vmul.f32 %v373, 1.442695
        %v384 = vpow.pop %v383
        %v385 = vmul.f32 %v374, 1.442695
        %v386 = vpow.pop %v385
        %v387 = vmul.f32 %v375, 1.442695
        %v388 = vpow.pop %v387
        %v389 = vmul.f32 %v376, 1.442695
        %v390 = vpow.pop %v389
        %v391 = vmul.f32 %v377, 1.442695
        %v392 = vpow.pop %v391
        %v393 = vmul.f32 %v378, 1.442695
        %v394 = vpow.pop %v393
        %v395 = vmul.f32 %v363, %v380
        %v396 = vmul.f32 %v364, %v382
        %v397 = vmul.f32 %v365, %v384
        %v398 = vmul.f32 %v366, %v386
        %v399 = vmul.f32 %v367, %v388
        %v400 = vmul.f32 %v368, %v390
        %v401 = vmul.f32 %v369, %v392
        %v402 = vmul.f32 %v370, %v394
        %s403 = sld [smem:[#allocation7]]
        %v404 = vstv %s403
        %v405 = vmul.f32 %v404, %v287
        %v406 = vmul.f32 %v404, %v288
        %v407 = vmul.f32 %v404, %v289
        %v408 = vmul.f32 %v404, %v290
        %v409 = vmul.f32 %v404, %v291
        %v410 = vmul.f32 %v404, %v292
        %v411 = vmul.f32 %v404, %v293
        %v412 = vmul.f32 %v404, %v294
        %v413 = vld [vmem:[%s251 + $0x1] sm:$0x1]
        %v414 = vld [vmem:[%s251 + $0x5] sm:$0x1]
        %v415 = vld [vmem:[%s251 + $0x9] sm:$0x1]
        %v416 = vld [vmem:[%s251 + $0xd] sm:$0x1]
        %v417 = vld [vmem:[%s251 + $0x11] sm:$0x1]
        %v418 = vld [vmem:[%s251 + $0x15] sm:$0x1]
        %v419 = vld [vmem:[%s251 + $0x19] sm:$0x1]
        %v420 = vld [vmem:[%s251 + $0x1d] sm:$0x1]
        %s421 = scalar_lea.vmem %s1, 8
        %v422 = vld [vmem:[%s421] sm:$0xff]
        %v423 = vlaneseq
        %v424 = vshrl.u32 %v423, 7
        %v425 = vsub.s32 0, %v424
        %v426 = vrot.slane %v413, %v425
        %v427 = vlaneseq
        %v428 = vshrl.u32 %v427, 7
        %v429 = vsub.s32 0, %v428
        %v430 = vrot.slane %v414, %v429
        %v431 = vlaneseq
        %v432 = vshrl.u32 %v431, 7
        %v433 = vsub.s32 0, %v432
        %v434 = vrot.slane %v415, %v433
        %v435 = vlaneseq
        %v436 = vshrl.u32 %v435, 7
        %v437 = vsub.s32 0, %v436
        %v438 = vrot.slane %v416, %v437
        %v439 = vlaneseq
        %v440 = vshrl.u32 %v439, 7
        %v441 = vsub.s32 0, %v440
        %v442 = vrot.slane %v417, %v441
        %v443 = vlaneseq
        %v444 = vshrl.u32 %v443, 7
        %v445 = vsub.s32 0, %v444
        %v446 = vrot.slane %v418, %v445
        %v447 = vlaneseq
        %v448 = vshrl.u32 %v447, 7
        %v449 = vsub.s32 0, %v448
        %v450 = vrot.slane %v419, %v449
        %v451 = vlaneseq
        %v452 = vshrl.u32 %v451, 7
        %v453 = vsub.s32 0, %v452
        %v454 = vrot.slane %v420, %v453
        %456 = vset.pattern.permute.xlu0 0
        %457 = vperm.xlu0 %456, %v422
        %v458 = vpop.permute.xlu0 %457
        %v460 = vsub.f32 %v426, %v458
        %v461 = vsub.f32 %v430, %v458
        %v462 = vsub.f32 %v434, %v458
        %v463 = vsub.f32 %v438, %v458
        %v464 = vsub.f32 %v442, %v458
        %v465 = vsub.f32 %v446, %v458
        %v466 = vsub.f32 %v450, %v458
        %v467 = vsub.f32 %v454, %v458
        %s468 = scalar_lea.vmem %s2, 8
        %v469 = vld [vmem:[%s468] sm:$0xff]
        %471 = vset.pattern.permute.xlu0 0
        %472 = vperm.xlu0 %471, %v469
        %v473 = vpop.permute.xlu0 %472
        %v475 = vmul.f32 %v460, %v473
        %v476 = vmul.f32 %v461, %v473
        %v477 = vmul.f32 %v462, %v473
        %v478 = vmul.f32 %v463, %v473
        %v479 = vmul.f32 %v464, %v473
        %v480 = vmul.f32 %v465, %v473
        %v481 = vmul.f32 %v466, %v473
        %v482 = vmul.f32 %v467, %v473
        %v483 = vmul.f32 %v475, %v475
        %v484 = vmul.f32 %v476, %v476
        %v485 = vmul.f32 %v477, %v477
        %v486 = vmul.f32 %v478, %v478
        %v487 = vmul.f32 %v479, %v479
        %v488 = vmul.f32 %v480, %v480
        %v489 = vmul.f32 %v481, %v481
        %v490 = vmul.f32 %v482, %v482
        %v491 = vsub.f32 1.0, %v483
        %v492 = vsub.f32 1.0, %v484
        %v493 = vsub.f32 1.0, %v485
        %v494 = vsub.f32 1.0, %v486
        %v495 = vsub.f32 1.0, %v487
        %v496 = vsub.f32 1.0, %v488
        %v497 = vsub.f32 1.0, %v489
        %v498 = vsub.f32 1.0, %v490
        %v499 = vmul.f32 %v483, -0.5
        %v500 = vmul.f32 %v484, -0.5
        %v501 = vmul.f32 %v485, -0.5
        %v502 = vmul.f32 %v486, -0.5
        %v503 = vmul.f32 %v487, -0.5
        %v504 = vmul.f32 %v488, -0.5
        %v505 = vmul.f32 %v489, -0.5
        %v506 = vmul.f32 %v490, -0.5
        %v507 = vmul.f32 %v499, 1.442695
        %v508 = vpow.pop %v507
        %v509 = vmul.f32 %v500, 1.442695
        %v510 = vpow.pop %v509
        %v511 = vmul.f32 %v501, 1.442695
        %v512 = vpow.pop %v511
        %v513 = vmul.f32 %v502, 1.442695
        %v514 = vpow.pop %v513
        %v515 = vmul.f32 %v503, 1.442695
        %v516 = vpow.pop %v515
        %v517 = vmul.f32 %v504, 1.442695
        %v518 = vpow.pop %v517
        %v519 = vmul.f32 %v505, 1.442695
        %v520 = vpow.pop %v519
        %v521 = vmul.f32 %v506, 1.442695
        %v522 = vpow.pop %v521
        %v523 = vmul.f32 %v491, %v508
        %v524 = vmul.f32 %v492, %v510
        %v525 = vmul.f32 %v493, %v512
        %v526 = vmul.f32 %v494, %v514
        %v527 = vmul.f32 %v495, %v516
        %v528 = vmul.f32 %v496, %v518
        %v529 = vmul.f32 %v497, %v520
        %v530 = vmul.f32 %v498, %v522
        %v531 = vmul.f32 %v395, %v523
        %v532 = vmul.f32 %v396, %v524
        %v533 = vmul.f32 %v397, %v525
        %v534 = vmul.f32 %v398, %v526
        %v535 = vmul.f32 %v399, %v527
        %v536 = vmul.f32 %v400, %v528
        %v537 = vmul.f32 %v401, %v529
        %v538 = vmul.f32 %v402, %v530
        %s539 = sld [smem:[#allocation7 + $0x1]]
        %v540 = vstv %s539
        %v541 = vmul.f32 %v540, %v413
        %v542 = vmul.f32 %v540, %v414
        %v543 = vmul.f32 %v540, %v415
        %v544 = vmul.f32 %v540, %v416
        %v545 = vmul.f32 %v540, %v417
        %v546 = vmul.f32 %v540, %v418
        %v547 = vmul.f32 %v540, %v419
        %v548 = vmul.f32 %v540, %v420
        %v549 = vadd.f32 %v405, %v541
        %v550 = vadd.f32 %v406, %v542
        %v551 = vadd.f32 %v407, %v543
        %v552 = vadd.f32 %v408, %v544
        %v553 = vadd.f32 %v409, %v545
        %v554 = vadd.f32 %v410, %v546
        %v555 = vadd.f32 %v411, %v547
        %v556 = vadd.f32 %v412, %v548
        %v557 = vld [vmem:[%s251 + $0x2] sm:$0x1]
        %v558 = vld [vmem:[%s251 + $0x6] sm:$0x1]
        %v559 = vld [vmem:[%s251 + $0xa] sm:$0x1]
        %v560 = vld [vmem:[%s251 + $0xe] sm:$0x1]
        %v561 = vld [vmem:[%s251 + $0x12] sm:$0x1]
        %v562 = vld [vmem:[%s251 + $0x16] sm:$0x1]
        %v563 = vld [vmem:[%s251 + $0x1a] sm:$0x1]
        %v564 = vld [vmem:[%s251 + $0x1e] sm:$0x1]
        %s565 = scalar_lea.vmem %s1, 16
        %v566 = vld [vmem:[%s565] sm:$0xff]
        %v567 = vlaneseq
        %v568 = vshrl.u32 %v567, 7
        %v569 = vsub.s32 0, %v568
        %v570 = vrot.slane %v557, %v569
        %v571 = vlaneseq
        %v572 = vshrl.u32 %v571, 7
        %v573 = vsub.s32 0, %v572
        %v574 = vrot.slane %v558, %v573
        %v575 = vlaneseq
        %v576 = vshrl.u32 %v575, 7
        %v577 = vsub.s32 0, %v576
        %v578 = vrot.slane %v559, %v577
        %v579 = vlaneseq
        %v580 = vshrl.u32 %v579, 7
        %v581 = vsub.s32 0, %v580
        %v582 = vrot.slane %v560, %v581
        %v583 = vlaneseq
        %v584 = vshrl.u32 %v583, 7
        %v585 = vsub.s32 0, %v584
        %v586 = vrot.slane %v561, %v585
        %v587 = vlaneseq
        %v588 = vshrl.u32 %v587, 7
        %v589 = vsub.s32 0, %v588
        %v590 = vrot.slane %v562, %v589
        %v591 = vlaneseq
        %v592 = vshrl.u32 %v591, 7
        %v593 = vsub.s32 0, %v592
        %v594 = vrot.slane %v563, %v593
        %v595 = vlaneseq
        %v596 = vshrl.u32 %v595, 7
        %v597 = vsub.s32 0, %v596
        %v598 = vrot.slane %v564, %v597
        %600 = vset.pattern.permute.xlu0 0
        %601 = vperm.xlu0 %600, %v566
        %v602 = vpop.permute.xlu0 %601
        %v604 = vsub.f32 %v570, %v602
        %v605 = vsub.f32 %v574, %v602
        %v606 = vsub.f32 %v578, %v602
        %v607 = vsub.f32 %v582, %v602
        %v608 = vsub.f32 %v586, %v602
        %v609 = vsub.f32 %v590, %v602
        %v610 = vsub.f32 %v594, %v602
        %v611 = vsub.f32 %v598, %v602
        %s612 = scalar_lea.vmem %s2, 16
        %v613 = vld [vmem:[%s612] sm:$0xff]
        %615 = vset.pattern.permute.xlu0 0
        %616 = vperm.xlu0 %615, %v613
        %v617 = vpop.permute.xlu0 %616
        %v619 = vmul.f32 %v604, %v617
        %v620 = vmul.f32 %v605, %v617
        %v621 = vmul.f32 %v606, %v617
        %v622 = vmul.f32 %v607, %v617
        %v623 = vmul.f32 %v608, %v617
        %v624 = vmul.f32 %v609, %v617
        %v625 = vmul.f32 %v610, %v617
        %v626 = vmul.f32 %v611, %v617
        %v627 = vmul.f32 %v619, %v619
        %v628 = vmul.f32 %v620, %v620
        %v629 = vmul.f32 %v621, %v621
        %v630 = vmul.f32 %v622, %v622
        %v631 = vmul.f32 %v623, %v623
        %v632 = vmul.f32 %v624, %v624
        %v633 = vmul.f32 %v625, %v625
        %v634 = vmul.f32 %v626, %v626
        %v635 = vsub.f32 1.0, %v627
        %v636 = vsub.f32 1.0, %v628
        %v637 = vsub.f32 1.0, %v629
        %v638 = vsub.f32 1.0, %v630
        %v639 = vsub.f32 1.0, %v631
        %v640 = vsub.f32 1.0, %v632
        %v641 = vsub.f32 1.0, %v633
        %v642 = vsub.f32 1.0, %v634
        %v643 = vmul.f32 %v627, -0.5
        %v644 = vmul.f32 %v628, -0.5
        %v645 = vmul.f32 %v629, -0.5
        %v646 = vmul.f32 %v630, -0.5
        %v647 = vmul.f32 %v631, -0.5
        %v648 = vmul.f32 %v632, -0.5
        %v649 = vmul.f32 %v633, -0.5
        %v650 = vmul.f32 %v634, -0.5
        %v651 = vmul.f32 %v643, 1.442695
        %v652 = vpow.pop %v651
        %v653 = vmul.f32 %v644, 1.442695
        %v654 = vpow.pop %v653
        %v655 = vmul.f32 %v645, 1.442695
        %v656 = vpow.pop %v655
        %v657 = vmul.f32 %v646, 1.442695
        %v658 = vpow.pop %v657
        %v659 = vmul.f32 %v647, 1.442695
        %v660 = vpow.pop %v659
        %v661 = vmul.f32 %v648, 1.442695
        %v662 = vpow.pop %v661
        %v663 = vmul.f32 %v649, 1.442695
        %v664 = vpow.pop %v663
        %v665 = vmul.f32 %v650, 1.442695
        %v666 = vpow.pop %v665
        %v667 = vmul.f32 %v635, %v652
        %v668 = vmul.f32 %v636, %v654
        %v669 = vmul.f32 %v637, %v656
        %v670 = vmul.f32 %v638, %v658
        %v671 = vmul.f32 %v639, %v660
        %v672 = vmul.f32 %v640, %v662
        %v673 = vmul.f32 %v641, %v664
        %v674 = vmul.f32 %v642, %v666
        %v675 = vmul.f32 %v531, %v667
        %v676 = vmul.f32 %v532, %v668
        %v677 = vmul.f32 %v533, %v669
        %v678 = vmul.f32 %v534, %v670
        %v679 = vmul.f32 %v535, %v671
        %v680 = vmul.f32 %v536, %v672
        %v681 = vmul.f32 %v537, %v673
        %v682 = vmul.f32 %v538, %v674
        %s683 = sld [smem:[#allocation7 + $0x2]]
        %v684 = vstv %s683
        %v685 = vmul.f32 %v684, %v557
        %v686 = vmul.f32 %v684, %v558
        %v687 = vmul.f32 %v684, %v559
        %v688 = vmul.f32 %v684, %v560
        %v689 = vmul.f32 %v684, %v561
        %v690 = vmul.f32 %v684, %v562
        %v691 = vmul.f32 %v684, %v563
        %v692 = vmul.f32 %v684, %v564
        %v693 = vadd.f32 %v549, %v685
        %v694 = vadd.f32 %v550, %v686
        %v695 = vadd.f32 %v551, %v687
        %v696 = vadd.f32 %v552, %v688
        %v697 = vadd.f32 %v553, %v689
        %v698 = vadd.f32 %v554, %v690
        %v699 = vadd.f32 %v555, %v691
        %v700 = vadd.f32 %v556, %v692
        %v701 = vld [vmem:[%s251 + $0x3] sm:$0x1]
        %v702 = vld [vmem:[%s251 + $0x7] sm:$0x1]
        %v703 = vld [vmem:[%s251 + $0xb] sm:$0x1]
        %v704 = vld [vmem:[%s251 + $0xf] sm:$0x1]
        %v705 = vld [vmem:[%s251 + $0x13] sm:$0x1]
        %v706 = vld [vmem:[%s251 + $0x17] sm:$0x1]
        %v707 = vld [vmem:[%s251 + $0x1b] sm:$0x1]
        %v708 = vld [vmem:[%s251 + $0x1f] sm:$0x1]
        %s709 = scalar_lea.vmem %s1, 24
        %v710 = vld [vmem:[%s709] sm:$0xff]
        %v711 = vlaneseq
        %v712 = vshrl.u32 %v711, 7
        %v713 = vsub.s32 0, %v712
        %v714 = vrot.slane %v701, %v713
        %v715 = vlaneseq
        %v716 = vshrl.u32 %v715, 7
        %v717 = vsub.s32 0, %v716
        %v718 = vrot.slane %v702, %v717
        %v719 = vlaneseq
        %v720 = vshrl.u32 %v719, 7
        %v721 = vsub.s32 0, %v720
        %v722 = vrot.slane %v703, %v721
        %v723 = vlaneseq
        %v724 = vshrl.u32 %v723, 7
        %v725 = vsub.s32 0, %v724
        %v726 = vrot.slane %v704, %v725
        %v727 = vlaneseq
        %v728 = vshrl.u32 %v727, 7
        %v729 = vsub.s32 0, %v728
        %v730 = vrot.slane %v705, %v729
        %v731 = vlaneseq
        %v732 = vshrl.u32 %v731, 7
        %v733 = vsub.s32 0, %v732
        %v734 = vrot.slane %v706, %v733
        %v735 = vlaneseq
        %v736 = vshrl.u32 %v735, 7
        %v737 = vsub.s32 0, %v736
        %v738 = vrot.slane %v707, %v737
        %v739 = vlaneseq
        %v740 = vshrl.u32 %v739, 7
        %v741 = vsub.s32 0, %v740
        %v742 = vrot.slane %v708, %v741
        %744 = vset.pattern.permute.xlu0 0
        %745 = vperm.xlu0 %744, %v710
        %v746 = vpop.permute.xlu0 %745
        %v748 = vsub.f32 %v714, %v746
        %v749 = vsub.f32 %v718, %v746
        %v750 = vsub.f32 %v722, %v746
        %v751 = vsub.f32 %v726, %v746
        %v752 = vsub.f32 %v730, %v746
        %v753 = vsub.f32 %v734, %v746
        %v754 = vsub.f32 %v738, %v746
        %v755 = vsub.f32 %v742, %v746
        %s756 = scalar_lea.vmem %s2, 24
        %v757 = vld [vmem:[%s756] sm:$0xff]
        %759 = vset.pattern.permute.xlu0 0
        %760 = vperm.xlu0 %759, %v757
        %v761 = vpop.permute.xlu0 %760
        %v763 = vmul.f32 %v748, %v761
        %v764 = vmul.f32 %v749, %v761
        %v765 = vmul.f32 %v750, %v761
        %v766 = vmul.f32 %v751, %v761
        %v767 = vmul.f32 %v752, %v761
        %v768 = vmul.f32 %v753, %v761
        %v769 = vmul.f32 %v754, %v761
        %v770 = vmul.f32 %v755, %v761
        %v771 = vmul.f32 %v763, %v763
        %v772 = vmul.f32 %v764, %v764
        %v773 = vmul.f32 %v765, %v765
        %v774 = vmul.f32 %v766, %v766
        %v775 = vmul.f32 %v767, %v767
        %v776 = vmul.f32 %v768, %v768
        %v777 = vmul.f32 %v769, %v769
        %v778 = vmul.f32 %v770, %v770
        %v779 = vsub.f32 1.0, %v771
        %v780 = vsub.f32 1.0, %v772
        %v781 = vsub.f32 1.0, %v773
        %v782 = vsub.f32 1.0, %v774
        %v783 = vsub.f32 1.0, %v775
        %v784 = vsub.f32 1.0, %v776
        %v785 = vsub.f32 1.0, %v777
        %v786 = vsub.f32 1.0, %v778
        %v787 = vmul.f32 %v771, -0.5
        %v788 = vmul.f32 %v772, -0.5
        %v789 = vmul.f32 %v773, -0.5
        %v790 = vmul.f32 %v774, -0.5
        %v791 = vmul.f32 %v775, -0.5
        %v792 = vmul.f32 %v776, -0.5
        %v793 = vmul.f32 %v777, -0.5
        %v794 = vmul.f32 %v778, -0.5
        %v795 = vmul.f32 %v787, 1.442695
        %v796 = vpow.pop %v795
        %v797 = vmul.f32 %v788, 1.442695
        %v798 = vpow.pop %v797
        %v799 = vmul.f32 %v789, 1.442695
        %v800 = vpow.pop %v799
        %v801 = vmul.f32 %v790, 1.442695
        %v802 = vpow.pop %v801
        %v803 = vmul.f32 %v791, 1.442695
        %v804 = vpow.pop %v803
        %v805 = vmul.f32 %v792, 1.442695
        %v806 = vpow.pop %v805
        %v807 = vmul.f32 %v793, 1.442695
        %v808 = vpow.pop %v807
        %v809 = vmul.f32 %v794, 1.442695
        %v810 = vpow.pop %v809
        %v811 = vmul.f32 %v779, %v796
        %v812 = vmul.f32 %v780, %v798
        %v813 = vmul.f32 %v781, %v800
        %v814 = vmul.f32 %v782, %v802
        %v815 = vmul.f32 %v783, %v804
        %v816 = vmul.f32 %v784, %v806
        %v817 = vmul.f32 %v785, %v808
        %v818 = vmul.f32 %v786, %v810
        %v819 = vmul.f32 %v675, %v811
        %v820 = vmul.f32 %v676, %v812
        %v821 = vmul.f32 %v677, %v813
        %v822 = vmul.f32 %v678, %v814
        %v823 = vmul.f32 %v679, %v815
        %v824 = vmul.f32 %v680, %v816
        %v825 = vmul.f32 %v681, %v817
        %v826 = vmul.f32 %v682, %v818
        %s827 = sld [smem:[#allocation7 + $0x3]]
        %v828 = vstv %s827
        %v829 = vmul.f32 %v828, %v701
        %v830 = vmul.f32 %v828, %v702
        %v831 = vmul.f32 %v828, %v703
        %v832 = vmul.f32 %v828, %v704
        %v833 = vmul.f32 %v828, %v705
        %v834 = vmul.f32 %v828, %v706
        %v835 = vmul.f32 %v828, %v707
        %v836 = vmul.f32 %v828, %v708
        %v837 = vadd.f32 %v693, %v829
        %v838 = vadd.f32 %v694, %v830
        %v839 = vadd.f32 %v695, %v831
        %v840 = vadd.f32 %v696, %v832
        %v841 = vadd.f32 %v697, %v833
        %v842 = vadd.f32 %v698, %v834
        %v843 = vadd.f32 %v699, %v835
        %v844 = vadd.f32 %v700, %v836
        %v845 = vld [vmem:[%s3] sm:$0xff]
        %847 = vset.pattern.permute.xlu0 0
        %848 = vperm.xlu0 %847, %v845
        %v849 = vpop.permute.xlu0 %848
        %v851 = vmul.f32 %v849, %v819
        %v852 = vmul.f32 %v849, %v820
        %v853 = vmul.f32 %v849, %v821
        %v854 = vmul.f32 %v849, %v822
        %v855 = vmul.f32 %v849, %v823
        %v856 = vmul.f32 %v849, %v824
        %v857 = vmul.f32 %v849, %v825
        %v858 = vmul.f32 %v849, %v826
        %v859 = vrot.slane %v851, 4
        %v860 = vadd.f32 %v851, %v859
        %v861 = vrot.slane %v860, 2
        %v862 = vadd.f32 %v860, %v861
        %v863 = vrot.slane %v862, 1
        %v864 = vadd.f32 %v862, %v863
        %v865 = vrot.slane %v852, 4
        %v866 = vadd.f32 %v852, %v865
        %v867 = vrot.slane %v866, 2
        %v868 = vadd.f32 %v866, %v867
        %v869 = vrot.slane %v868, 1
        %v870 = vadd.f32 %v868, %v869
        %v871 = vrot.slane %v853, 4
        %v872 = vadd.f32 %v853, %v871
        %v873 = vrot.slane %v872, 2
        %v874 = vadd.f32 %v872, %v873
        %v875 = vrot.slane %v874, 1
        %v876 = vadd.f32 %v874, %v875
        %v877 = vrot.slane %v854, 4
        %v878 = vadd.f32 %v854, %v877
        %v879 = vrot.slane %v878, 2
        %v880 = vadd.f32 %v878, %v879
        %v881 = vrot.slane %v880, 1
        %v882 = vadd.f32 %v880, %v881
        %v883 = vrot.slane %v855, 4
        %v884 = vadd.f32 %v855, %v883
        %v885 = vrot.slane %v884, 2
        %v886 = vadd.f32 %v884, %v885
        %v887 = vrot.slane %v886, 1
        %v888 = vadd.f32 %v886, %v887
        %v889 = vrot.slane %v856, 4
        %v890 = vadd.f32 %v856, %v889
        %v891 = vrot.slane %v890, 2
        %v892 = vadd.f32 %v890, %v891
        %v893 = vrot.slane %v892, 1
        %v894 = vadd.f32 %v892, %v893
        %v895 = vrot.slane %v857, 4
        %v896 = vadd.f32 %v857, %v895
        %v897 = vrot.slane %v896, 2
        %v898 = vadd.f32 %v896, %v897
        %v899 = vrot.slane %v898, 1
        %v900 = vadd.f32 %v898, %v899
        %v901 = vrot.slane %v858, 4
        %v902 = vadd.f32 %v858, %v901
        %v903 = vrot.slane %v902, 2
        %v904 = vadd.f32 %v902, %v903
        %v905 = vrot.slane %v904, 1
        %v906 = vadd.f32 %v904, %v905
        %s907 = sld [smem:[#allocation2]]
        %v908 = vstv %s907
        %v909 = vadd.f32 %v908, %v864
        %v910 = vadd.f32 %v908, %v870
        %v911 = vadd.f32 %v908, %v876
        %v912 = vadd.f32 %v908, %v882
        %v913 = vadd.f32 %v908, %v888
        %v914 = vadd.f32 %v908, %v894
        %v915 = vadd.f32 %v908, %v900
        %v916 = vadd.f32 %v908, %v906
        %v917 = vadd.f32 %v909, %v837
        %v918 = vadd.f32 %v910, %v838
        %v919 = vadd.f32 %v911, %v839
        %v920 = vadd.f32 %v912, %v840
        %v921 = vadd.f32 %v913, %v841
        %v922 = vadd.f32 %v914, %v842
        %v923 = vadd.f32 %v915, %v843
        %v924 = vadd.f32 %v916, %v844
        %925 = vst [vmem:[%s284] sm:$0x1] %v917
        %926 = vst [vmem:[%s284 + $0x1] sm:$0x1] %v918
        %927 = vst [vmem:[%s284 + $0x2] sm:$0x1] %v919
        %928 = vst [vmem:[%s284 + $0x3] sm:$0x1] %v920
        %929 = vst [vmem:[%s284 + $0x4] sm:$0x1] %v921
        %930 = vst [vmem:[%s284 + $0x5] sm:$0x1] %v922
        %931 = vst [vmem:[%s284 + $0x6] sm:$0x1] %v923
        %932 = vst [vmem:[%s284 + $0x7] sm:$0x1] %v924
        %s933 = sand.u32 %s164, 1
        %s934 = scalar_lea.sflag [#allocation5], %s933
        %s935 = sand.u32 %s164, 1
        %s936 = smul.addr %s935, 8
        %s937 = scalar_lea.vmem [#allocation8], %s936
        // Predicated region
        $region53: #{tpu_custom_call.1} parent=43 // pred_check
          %p938 = pneg %p174
        $region54: #{tpu_custom_call.1} parent=43 // pred_check_branch
          %940 = sbr.rel (%p938) target = $region56
        $region55: #{tpu_custom_call.1} parent=43 // pred_region
          %s941 = smul.u32 8, %s25
          %s943 = ssub.s32 128, 128
          %944 = vsyncadd %s934, %s943
          %s945 = smul.addr %s941, 16
          %s946 = scalar_lea.hbm %s6, %s945
          %s947 = sshll.u32 %s937, 4
          %s948 = int_to_ptr.vmem [resolvable:$true] %s947
          %953 = dma.vmem_to_hbm [thread:$0]  %s948, 128, %s946, %s934, 16, 16, 1
        $region56: #{tpu_custom_call.1} parent=43 // pred_fallthru
          _
      $region44: #{tpu_custom_call.1} parent=5 // pred_fallthru
        _
      %p954 = scmp.le.s32.totalorder 2, %s20
      // Predicated region
      $region57: #{tpu_custom_call.1} parent=5 // pred_check
        %p955 = pneg %p954
      $region58: #{tpu_custom_call.1} parent=5 // pred_check_branch
        %957 = sbr.rel (%p955) target = $region60
      $region59: #{tpu_custom_call.1} parent=5 // pred_region
        %s958 = ssub.s32 %s20, 2
        // Predicated region
        $region61: #{tpu_custom_call.1} parent=59 // pred_check
          %p959 = pneg %p180
        $region62: #{tpu_custom_call.1} parent=59 // pred_check_branch
          %961 = sbr.rel (%p959) target = $region64
        $region63: #{tpu_custom_call.1} parent=59 // pred_region
          %s962 = sand.u32 %s165, 1
          %s963 = scalar_lea.sflag [#allocation5], %s962
          %s964 = sand.u32 %s165, 1
          %s965 = smul.addr %s964, 8
          %s966 = scalar_lea.vmem [#allocation8], %s965
          %967 = dma.done %s963, 128
        $region64: #{tpu_custom_call.1} parent=59 // pred_fallthru
          _
      $region60: #{tpu_custom_call.1} parent=5 // pred_fallthru
        _
    $region6: #{tpu_custom_call.1} parent=1 // loop_footer
      %s24 = sadd.s32 1, %s20
    $region7: #{tpu_custom_call.1} parent=1 // loop_footer_branch
      %19 = sbr.rel target = $region3
    $region8: #{tpu_custom_call.1} parent=1 // loop_exit
      _
    %968 = vsyncpa [#allocation4], 1
    %s969 = scalar_lea.sflag [#allocation4], 1
    %970 = vsyncpa %s969, 1
    %971 = vsyncpa [#allocation5], 1
    %s972 = scalar_lea.sflag [#allocation5], 1
    %973 = vsyncpa %s972, 1
    %974 = vsyncpa [#allocation6], 1
    %s975 = scalar_lea.sflag [#allocation6], 1
    %976 = vsyncpa %s975, 1

</llo_original>
